<compile_context>
chip_gen: v6e
topology: v6e:2x2x1
jax: 0.10.0
libtpu: 0.0.40
codegen_flags: <defaults>
</compile_context>

<pallas_src>
import functools

import jax
import jax.numpy as jnp
import numpy as np
from jax.experimental import pallas as pl
from jax.experimental.pallas import tpu as pltpu


def _round_up(x, m):
    return ((x + m - 1) // m) * m


def neucf_kernel(u_ref, v_ref,
                 w0u_ref, w0i_ref, b0_ref,
                 w1_ref, b1_ref,
                 wfg_ref, wfh_ref, bf_ref,
                 out_ref, *, dim_gfm):
    u = u_ref[...]                            # (TB, Dg+Dm) bf16
    v = v_ref[...]                            # (TB, Dg+Dm) bf16

    # GFM branch: elementwise product of user/item GFM embeddings (VPU, f32).
    ug = u[:, :dim_gfm].astype(jnp.float32)
    ig = v[:, :dim_gfm].astype(jnp.float32)
    out_gfm = ug * ig                                                     # (TB, Dg)

    # MLP branch: cat(user, item, -1) @ W0 + b0 == user @ W0u + item @ W0i + b0
    # (concat folded into split matmuls). bf16 inputs, f32 accumulation.
    um = u[:, dim_gfm:]
    im = v[:, dim_gfm:]
    h = (jnp.dot(um, w0u_ref[...], preferred_element_type=jnp.float32)
         + jnp.dot(im, w0i_ref[...], preferred_element_type=jnp.float32)
         + b0_ref[...])                                                   # (TB, H0)
    h = (jnp.dot(h, w1_ref[...].astype(jnp.float32),
                 preferred_element_type=jnp.float32)
         + b1_ref[...])                                                   # (TB, H1)
    # mlp.layers ends with a single ReLU (no ReLU between the two Linears),
    # matching the reference module exactly.
    h = jnp.maximum(h, 0.0)

    # Fusion head: sigmoid(cat(out_gfm, h, -1) @ Wf + bf).  N=1 output, so use
    # broadcast-multiply + lane reductions (VPU/XLU) instead of 1-wide MXU dots.
    wfg = wfg_ref[...].astype(jnp.float32)          # (1, Dg)
    wfh = wfh_ref[...].astype(jnp.float32)          # (1, H1)
    logit = (jnp.sum(out_gfm * wfg, axis=-1, keepdims=True)
             + jnp.sum(h * wfh, axis=-1, keepdims=True)
             + bf_ref[...])                                               # (TB, 1)
    out_ref[...] = 1.0 / (1.0 + jnp.exp(-logit))


def neucf_forward(user, item, params, *, dim_gfm, block_b=1024):
    """user, item: int32 [B]. Returns float32 [B]."""
    # Single gather per side: GFM + MLP embeddings stored contiguously per id.
    u = jnp.take(params["u_emb"], user, axis=0)     # (B, Dg+Dm) bf16
    v = jnp.take(params["v_emb"], item, axis=0)     # (B, Dg+Dm) bf16

    B = user.shape[0]
    TB = min(block_b, _round_up(B, 8))              # f32 sublane multiple
    Bp = _round_up(B, TB)
    if Bp != B:
        u = jnp.pad(u, ((0, Bp - B), (0, 0)))
        v = jnp.pad(v, ((0, Bp - B), (0, 0)))

    D = u.shape[1]
    Dm = D - dim_gfm
    H0 = params["w0u"].shape[1]
    H1 = params["w1"].shape[1]

    act_spec = pl.BlockSpec((TB, D), lambda i: (i, 0))
    resident = lambda a: pl.BlockSpec(a.shape, lambda i: (0, 0))

    weights = (params["w0u"], params["w0i"], params["b0"],
               params["w1"], params["b1"],
               params["wfg_row"], params["wfh_row"], params["bf"])

    flops = 2 * Bp * (2 * Dm * H0 + H0 * H1) + Bp * (3 * dim_gfm + 3 * H1)
    bytes_accessed = (u.size * u.dtype.itemsize + v.size * v.dtype.itemsize
                      + sum(w.size * w.dtype.itemsize for w in weights)
                      + Bp * 4)

    out = pl.pallas_call(
        functools.partial(neucf_kernel, dim_gfm=dim_gfm),
        out_shape=jax.ShapeDtypeStruct((Bp, 1), jnp.float32),
        grid_spec=pltpu.PrefetchScalarGridSpec(
            num_scalar_prefetch=0,
            grid=(Bp // TB,),
            in_specs=[act_spec, act_spec] + [resident(w) for w in weights],
            out_specs=pl.BlockSpec((TB, 1), lambda i: (i, 0)),
        ),
        compiler_params=pltpu.CompilerParams(
            dimension_semantics=("parallel",),          # megacore on v7x
            vmem_limit_bytes=32 * 1024 * 1024,
        ),
        cost_estimate=pl.CostEstimate(
            flops=int(flops),
            transcendentals=int(Bp),
            bytes_accessed=int(bytes_accessed),
        ),
    )(u, v, *weights)
    return out[:B, 0]                                   # .view(-1) in the reference


def init_params(key, n_users, n_items, dim_gfm, dim_mlp, hidden_dim):
    # TODO(synk): kernel is specialized to len(hidden_dim) == 2 MLP layers.
    assert len(hidden_dim) == 2
    h0, h1 = hidden_dim
    ks = jax.random.split(key, 10)
    n = lambda k, shp: jax.random.normal(k, shp, jnp.float32) * 0.1
    bf16 = lambda x: x.astype(jnp.bfloat16)
    w0 = n(ks[4], (2 * dim_mlp, h0))         # Linear(2*Dm, H0), stored [in, out]
    wf = n(ks[8], (dim_gfm + h1, 1))         # Linear(Dg+H1, 1), concat order (gfm, mlp)
    return {
        # GFM + MLP embedding tables stored contiguously per id (one gather each).
        "u_emb": bf16(jnp.concatenate([n(ks[0], (n_users, dim_gfm)),
                                       n(ks[2], (n_users, dim_mlp))], axis=1)),
        "v_emb": bf16(jnp.concatenate([n(ks[1], (n_items, dim_gfm)),
                                       n(ks[3], (n_items, dim_mlp))], axis=1)),
        "w0u": bf16(w0[:dim_mlp, :]),
        "w0i": bf16(w0[dim_mlp:, :]),
        "b0": n(ks[5], (1, h0)),
        "w1": bf16(n(ks[6], (h0, h1))),
        "b1": n(ks[7], (1, h1)),
        "wfg_row": bf16(wf[:dim_gfm, :].T),     # (1, Dg)
        "wfh_row": bf16(wf[dim_gfm:, :].T),     # (1, H1)
        "bf": n(ks[9], (1, 1)),
    }


def neucf_reference(user, item, params, *, dim_gfm):
    # Pure-JAX reference mirroring the PyTorch forward (f32 math on bf16 params).
    hp = jax.lax.Precision.HIGHEST
    u = jnp.take(params["u_emb"], user, axis=0).astype(jnp.float32)
    v = jnp.take(params["v_emb"], item, axis=0).astype(jnp.float32)
    ug, um = u[:, :dim_gfm], u[:, dim_gfm:]
    ig, im = v[:, :dim_gfm], v[:, dim_gfm:]
    out_gfm = ug * ig
    w0 = jnp.concatenate([params["w0u"], params["w0i"]], axis=0).astype(jnp.float32)
    x = jnp.concatenate([um, im], axis=-1)
    h = jnp.dot(x, w0, precision=hp) + params["b0"]
    h = jnp.dot(h, params["w1"].astype(jnp.float32), precision=hp) + params["b1"]
    h = jnp.maximum(h, 0.0)
    wf = jnp.concatenate([params["wfg_row"], params["wfh_row"]],
                         axis=1).astype(jnp.float32)
    z = jnp.concatenate([out_gfm, h], axis=-1)
    logit = jnp.sum(z * wf, axis=-1, keepdims=True) + params["bf"]
    return (1.0 / (1.0 + jnp.exp(-logit))).reshape(-1)


if __name__ == "__main__":
    n_users, n_items = 100, 120
    dim_gfm, dim_mlp = 8, 8
    hidden_dim = (32, 16)
    batch = 256

    key = jax.random.PRNGKey(0)
    kp, ku, ki = jax.random.split(key, 3)
    params = init_params(kp, n_users, n_items, dim_gfm, dim_mlp, hidden_dim)
    user = jax.random.randint(ku, (batch,), 0, n_users, dtype=jnp.int32)
    item = jax.random.randint(ki, (batch,), 0, n_items, dtype=jnp.int32)

    out = neucf_forward(user, item, params, dim_gfm=dim_gfm, block_b=128)
    out = jax.block_until_ready(out)

    ref = jax.block_until_ready(neucf_reference(user, item, params, dim_gfm=dim_gfm))
    assert out.shape == (batch,)
    assert np.allclose(np.asarray(out, np.float32), np.asarray(ref, np.float32),
                       atol=2e-3, rtol=2e-3), \
        float(np.max(np.abs(np.asarray(out, np.float32) - np.asarray(ref, np.float32))))

    print("KERNEL_OK")
</pallas_src>

<mosaic_0001>
module attributes {stable_mosaic.version = 11 : i64} {
  func.func @neucf_kernel(%arg0: i32, %arg1: memref<128x16xbf16, #tpu.memory_space<vmem>>, %arg2: memref<128x16xbf16, #tpu.memory_space<vmem>>, %arg3: memref<8x32xbf16, #tpu.memory_space<vmem>>, %arg4: memref<8x32xbf16, #tpu.memory_space<vmem>>, %arg5: memref<1x32xf32, #tpu.memory_space<vmem>>, %arg6: memref<32x16xbf16, #tpu.memory_space<vmem>>, %arg7: memref<1x16xf32, #tpu.memory_space<vmem>>, %arg8: memref<1x8xbf16, #tpu.memory_space<vmem>>, %arg9: memref<1x16xbf16, #tpu.memory_space<vmem>>, %arg10: memref<1x1xf32, #tpu.memory_space<vmem>>, %arg11: memref<128x1xf32, #tpu.memory_space<vmem>>) attributes {dimension_semantics = [#tpu.dimension_semantics<parallel>], iteration_bounds = array<i64: 2>, scalar_prefetch = 0 : i64, scratch_operands = 0 : i64, tpu.core_type = #tpu.core_type<tc>, window_params = [{transform_indices = @transform_0, window_bounds = array<i64: 128, 16>}, {transform_indices = @transform_1, window_bounds = array<i64: 128, 16>}, {pipeline_mode = #tpu.pipeline_mode<synchronous>, transform_indices = @transform_2, window_bounds = array<i64: 8, 32>}, {pipeline_mode = #tpu.pipeline_mode<synchronous>, transform_indices = @transform_3, window_bounds = array<i64: 8, 32>}, {pipeline_mode = #tpu.pipeline_mode<synchronous>, transform_indices = @transform_4, window_bounds = array<i64: 1, 32>}, {pipeline_mode = #tpu.pipeline_mode<synchronous>, transform_indices = @transform_5, window_bounds = array<i64: 32, 16>}, {pipeline_mode = #tpu.pipeline_mode<synchronous>, transform_indices = @transform_6, window_bounds = array<i64: 1, 16>}, {pipeline_mode = #tpu.pipeline_mode<synchronous>, transform_indices = @transform_7, window_bounds = array<i64: 1, 8>}, {pipeline_mode = #tpu.pipeline_mode<synchronous>, transform_indices = @transform_8, window_bounds = array<i64: 1, 16>}, {pipeline_mode = #tpu.pipeline_mode<synchronous>, transform_indices = @transform_9, window_bounds = array<i64: 1, 1>}, {transform_indices = @transform_10, window_bounds = array<i64: 128, 1>}]} {
    %c0 = arith.constant 0 : index
    %c0_0 = arith.constant 0 : index
    %0 = vector.load %arg1[%c0, %c0_0] : memref<128x16xbf16, #tpu.memory_space<vmem>>, vector<128x16xbf16>
    %c0_1 = arith.constant 0 : index
    %c0_2 = arith.constant 0 : index
    %1 = vector.load %arg2[%c0_1, %c0_2] : memref<128x16xbf16, #tpu.memory_space<vmem>>, vector<128x16xbf16>
    %2 = vector.extract_strided_slice %0 {offsets = [0, 0], sizes = [128, 8], strides = [1, 1]} : vector<128x16xbf16> to vector<128x8xbf16>
    %3 = arith.extf %2 : vector<128x8xbf16> to vector<128x8xf32>
    %4 = vector.extract_strided_slice %1 {offsets = [0, 0], sizes = [128, 8], strides = [1, 1]} : vector<128x16xbf16> to vector<128x8xbf16>
    %5 = arith.extf %4 : vector<128x8xbf16> to vector<128x8xf32>
    %6 = arith.mulf %3, %5 : vector<128x8xf32>
    %7 = vector.extract_strided_slice %0 {offsets = [0, 8], sizes = [128, 8], strides = [1, 1]} : vector<128x16xbf16> to vector<128x8xbf16>
    %8 = vector.extract_strided_slice %1 {offsets = [0, 8], sizes = [128, 8], strides = [1, 1]} : vector<128x16xbf16> to vector<128x8xbf16>
    %c0_3 = arith.constant 0 : index
    %c0_4 = arith.constant 0 : index
    %9 = vector.load %arg3[%c0_3, %c0_4] : memref<8x32xbf16, #tpu.memory_space<vmem>>, vector<8x32xbf16>
    %cst = arith.constant dense<0.000000e+00> : vector<128x32xf32>
    %10 = tpu.matmul %7, %9, %cst {dimension_numbers = #tpu.dot_dimension_numbers<[1], [0], [0], [1], [0, 0, 1, 1], [], []>} : vector<128x8xbf16>, vector<8x32xbf16>, vector<128x32xf32> -> vector<128x32xf32>
    %c0_5 = arith.constant 0 : index
    %c0_6 = arith.constant 0 : index
    %11 = vector.load %arg4[%c0_5, %c0_6] : memref<8x32xbf16, #tpu.memory_space<vmem>>, vector<8x32xbf16>
    %cst_7 = arith.constant dense<0.000000e+00> : vector<128x32xf32>
    %12 = tpu.matmul %8, %11, %cst_7 {dimension_numbers = #tpu.dot_dimension_numbers<[1], [0], [0], [1], [0, 0, 1, 1], [], []>} : vector<128x8xbf16>, vector<8x32xbf16>, vector<128x32xf32> -> vector<128x32xf32>
    %13 = arith.addf %10, %12 : vector<128x32xf32>
    %c0_8 = arith.constant 0 : index
    %c0_9 = arith.constant 0 : index
    %14 = vector.load %arg5[%c0_8, %c0_9] : memref<1x32xf32, #tpu.memory_space<vmem>>, vector<1x32xf32>
    %15 = vector.broadcast %14 : vector<1x32xf32> to vector<128x32xf32>
    %16 = arith.addf %13, %15 : vector<128x32xf32>
    %c0_10 = arith.constant 0 : index
    %c0_11 = arith.constant 0 : index
    %17 = vector.load %arg6[%c0_10, %c0_11] : memref<32x16xbf16, #tpu.memory_space<vmem>>, vector<32x16xbf16>
    %18 = arith.extf %17 : vector<32x16xbf16> to vector<32x16xf32>
    %cst_12 = arith.constant dense<0.000000e+00> : vector<128x16xf32>
    %19 = tpu.matmul %16, %18, %cst_12 {dimension_numbers = #tpu.dot_dimension_numbers<[1], [0], [0], [1], [0, 0, 1, 1], [], []>} : vector<128x32xf32>, vector<32x16xf32>, vector<128x16xf32> -> vector<128x16xf32>
    %c0_13 = arith.constant 0 : index
    %c0_14 = arith.constant 0 : index
    %20 = vector.load %arg7[%c0_13, %c0_14] : memref<1x16xf32, #tpu.memory_space<vmem>>, vector<1x16xf32>
    %21 = vector.broadcast %20 : vector<1x16xf32> to vector<128x16xf32>
    %22 = arith.addf %19, %21 : vector<128x16xf32>
    %cst_15 = arith.constant 0.000000e+00 : f32
    %23 = vector.broadcast %cst_15 : f32 to vector<128x16xf32>
    %24 = arith.maximumf %22, %23 : vector<128x16xf32>
    %c0_16 = arith.constant 0 : index
    %c0_17 = arith.constant 0 : index
    %25 = vector.load %arg8[%c0_16, %c0_17] : memref<1x8xbf16, #tpu.memory_space<vmem>>, vector<1x8xbf16>
    %26 = arith.extf %25 : vector<1x8xbf16> to vector<1x8xf32>
    %c0_18 = arith.constant 0 : index
    %c0_19 = arith.constant 0 : index
    %27 = vector.load %arg9[%c0_18, %c0_19] : memref<1x16xbf16, #tpu.memory_space<vmem>>, vector<1x16xbf16>
    %28 = arith.extf %27 : vector<1x16xbf16> to vector<1x16xf32>
    %29 = vector.broadcast %26 : vector<1x8xf32> to vector<128x8xf32>
    %30 = arith.mulf %6, %29 : vector<128x8xf32>
    %cst_20 = arith.constant dense<0.000000e+00> : vector<128xf32>
    %31 = vector.multi_reduction <add>, %30, %cst_20 [1] : vector<128x8xf32> to vector<128xf32>
    %32 = vector.shape_cast %31 : vector<128xf32> to vector<128x1xf32>
    %33 = vector.broadcast %28 : vector<1x16xf32> to vector<128x16xf32>
    %34 = arith.mulf %24, %33 : vector<128x16xf32>
    %cst_21 = arith.constant dense<0.000000e+00> : vector<128xf32>
    %35 = vector.multi_reduction <add>, %34, %cst_21 [1] : vector<128x16xf32> to vector<128xf32>
    %36 = vector.shape_cast %35 : vector<128xf32> to vector<128x1xf32>
    %37 = arith.addf %32, %36 : vector<128x1xf32>
    %c0_22 = arith.constant 0 : index
    %c0_23 = arith.constant 0 : index
    %38 = vector.load %arg10[%c0_22, %c0_23] : memref<1x1xf32, #tpu.memory_space<vmem>>, vector<1x1xf32>
    %39 = vector.broadcast %38 : vector<1x1xf32> to vector<128x1xf32>
    %40 = arith.addf %37, %39 : vector<128x1xf32>
    %cst_24 = arith.constant 0.000000e+00 : f32
    %41 = vector.broadcast %cst_24 : f32 to vector<128x1xf32>
    %42 = arith.subf %41, %40 : vector<128x1xf32>
    %43 = math.exp %42 : vector<128x1xf32>
    %cst_25 = arith.constant 1.000000e+00 : f32
    %44 = vector.broadcast %cst_25 : f32 to vector<128x1xf32>
    %45 = arith.addf %44, %43 : vector<128x1xf32>
    %cst_26 = arith.constant 1.000000e+00 : f32
    %46 = vector.broadcast %cst_26 : f32 to vector<128x1xf32>
    %47 = arith.divf %46, %45 : vector<128x1xf32>
    %c0_27 = arith.constant 0 : index
    %c0_28 = arith.constant 0 : index
    %48 = vector.load %arg11[%c0_27, %c0_28] : memref<128x1xf32, #tpu.memory_space<vmem>>, vector<128x1xf32>
    tpu.vector_store %arg11[%c0_27, %c0_28], %47 {strides = array<i32>} : memref<128x1xf32, #tpu.memory_space<vmem>>, vector<128x1xf32>,
    return
  }
  func.func @transform_0(%arg0: i32) -> (i32, i32) {
    %c0_i32 = arith.constant 0 : i32
    %c0_i32_0 = arith.constant 0 : i32
    return %arg0, %c0_i32 : i32, i32
  }
  func.func @transform_1(%arg0: i32) -> (i32, i32) {
    %c0_i32 = arith.constant 0 : i32
    %c0_i32_0 = arith.constant 0 : i32
    return %arg0, %c0_i32 : i32, i32
  }
  func.func @transform_2(%arg0: i32) -> (i32, i32) {
    %c0_i32 = arith.constant 0 : i32
    %c0_i32_0 = arith.constant 0 : i32
    %c0_i32_1 = arith.constant 0 : i32
    return %c0_i32, %c0_i32_0 : i32, i32
  }
  func.func @transform_3(%arg0: i32) -> (i32, i32) {
    %c0_i32 = arith.constant 0 : i32
    %c0_i32_0 = arith.constant 0 : i32
    %c0_i32_1 = arith.constant 0 : i32
    return %c0_i32, %c0_i32_0 : i32, i32
  }
  func.func @transform_4(%arg0: i32) -> (i32, i32) {
    %c0_i32 = arith.constant 0 : i32
    %c0_i32_0 = arith.constant 0 : i32
    %c0_i32_1 = arith.constant 0 : i32
    return %c0_i32, %c0_i32_0 : i32, i32
  }
  func.func @transform_5(%arg0: i32) -> (i32, i32) {
    %c0_i32 = arith.constant 0 : i32
    %c0_i32_0 = arith.constant 0 : i32
    %c0_i32_1 = arith.constant 0 : i32
    return %c0_i32, %c0_i32_0 : i32, i32
  }
  func.func @transform_6(%arg0: i32) -> (i32, i32) {
    %c0_i32 = arith.constant 0 : i32
    %c0_i32_0 = arith.constant 0 : i32
    %c0_i32_1 = arith.constant 0 : i32
    return %c0_i32, %c0_i32_0 : i32, i32
  }
  func.func @transform_7(%arg0: i32) -> (i32, i32) {
    %c0_i32 = arith.constant 0 : i32
    %c0_i32_0 = arith.constant 0 : i32
    %c0_i32_1 = arith.constant 0 : i32
    return %c0_i32, %c0_i32_0 : i32, i32
  }
  func.func @transform_8(%arg0: i32) -> (i32, i32) {
    %c0_i32 = arith.constant 0 : i32
    %c0_i32_0 = arith.constant 0 : i32
    %c0_i32_1 = arith.constant 0 : i32
    return %c0_i32, %c0_i32_0 : i32, i32
  }
  func.func @transform_9(%arg0: i32) -> (i32, i32) {
    %c0_i32 = arith.constant 0 : i32
    %c0_i32_0 = arith.constant 0 : i32
    %c0_i32_1 = arith.constant 0 : i32
    return %c0_i32, %c0_i32_0 : i32, i32
  }
  func.func @transform_10(%arg0: i32) -> (i32, i32) {
    %c0_i32 = arith.constant 0 : i32
    %c0_i32_0 = arith.constant 0 : i32
    return %arg0, %c0_i32 : i32, i32
  }
}

</mosaic_0001>

<llo_original>
// kernel: tpu_custom_call.1
$region0: #{tpu_custom_call.1}
  #allocation0 [shape = 'u32[]', space=smem, size = 0x4, offset = 0x4, fixed_abs, tag = 'smem constant byte address 0x4 - core index']
  #allocation1 [shape = 'u32[144,128]{1,0:T(1,128)}', space=vmem, size = 0x12000, scoped, tag = 'internal scratch']
  #allocation2 [shape = 'f32[1,1]{1,0:T(1,128)S(1)}', space=vmem, size = 0x200, scoped, tag = 'scoped memory for tpu_custom_call.1']
  %s0 = inlined_call_operand.vmem [shape: bf16[256,16], index: 0, kind: input, shape index: {}]
  %s1 = inlined_call_operand.vmem [shape: bf16[256,16], index: 1, kind: input, shape index: {}]
  %s2 = inlined_call_operand.vmem [shape: bf16[8,32], index: 2, kind: input, shape index: {}]
  %s3 = inlined_call_operand.vmem [shape: bf16[8,32], index: 3, kind: input, shape index: {}]
  %s4 = inlined_call_operand.vmem [shape: f32[1,32], index: 4, kind: input, shape index: {}]
  %s5 = inlined_call_operand.vmem [shape: bf16[32,16], index: 5, kind: input, shape index: {}]
  %s6 = inlined_call_operand.vmem [shape: f32[1,16], index: 6, kind: input, shape index: {}]
  %s7 = inlined_call_operand.vmem [shape: bf16[1,8], index: 7, kind: input, shape index: {}]
  %s8 = inlined_call_operand.vmem [shape: bf16[1,16], index: 8, kind: input, shape index: {}]
  %s9 = inlined_call_operand.<no memory space> [shape: f32[1,1], index: 9, kind: input, shape index: {}]
  %s10 = inlined_call_operand.vmem [shape: f32[256,1], index: 10, kind: output, shape index: {}]
  %s11 = sld [smem:[#allocation0]]
  $region73: #{tpu_custom_call.1} parent=0
    _
  %s13 = ssub.s32 1, %s11
  %s14 = scalar_select 0, %s13, %s11
  %v15 = vstv %s9
  %16 = vst [vmem:[#allocation2] sm:$0x1] %v15
  loop: start=0, step=1, limit=4
  $region2: #{tpu_custom_call.1} parent=0 // loop_pre_header
    _
  $region3: #{tpu_custom_call.1} parent=0 // loop_header
    %s18 = sphi 0, %s22
    %p19 = scmp.ge.s32.totalorder %s18, 4
    %s28 = sphi 0, %s30
    %s31 = sphi 0, %s28
    %s32 = sphi 0, %s31
    %s48 = sphi 0, %s32
    %s54 = sphi 0, %s56
    %s57 = sphi 0, %s54
    %s58 = sphi 0, %s57
    %s74 = sphi 0, %s58
    %s78 = sphi 0, %s78
    %s80 = sphi 0, %s78
    %s81 = sphi 0, %s80
    %s95 = sphi 0, %s81
    %s99 = sphi 0, %s99
    %s101 = sphi 0, %s99
    %s102 = sphi 0, %s101
    %s116 = sphi 0, %s102
    %s120 = sphi 0, %s120
    %s122 = sphi 0, %s120
    %s123 = sphi 0, %s122
    %s137 = sphi 0, %s123
    %s141 = sphi 0, %s141
    %s143 = sphi 0, %s141
    %s144 = sphi 0, %s143
    %s158 = sphi 0, %s144
    %s162 = sphi 0, %s162
    %s164 = sphi 0, %s162
    %s165 = sphi 0, %s164
    %s179 = sphi 0, %s165
    %s183 = sphi 0, %s183
    %s185 = sphi 0, %s183
    %s186 = sphi 0, %s185
    %s200 = sphi 0, %s186
    %s204 = sphi 0, %s204
    %s206 = sphi 0, %s204
    %s207 = sphi 0, %s206
    %s221 = sphi 0, %s207
    %s225 = sphi 0, %s225
    %s227 = sphi 0, %s225
    %s228 = sphi 0, %s227
    %s242 = sphi 0, %s228
    %s248 = sphi 0, %s250
    %s251 = sphi 0, %s248
    %s252 = sphi 0, %s251
    %s268 = sphi 0, %s252
  $region4: #{tpu_custom_call.1} parent=0 // loop_header_branch
    %21 = sbr.rel (%p19) target = $region8
  $region5: #{tpu_custom_call.1} parent=0 // loop_body
    %s23 = ssub.s32 %s18, 1
    %s24 = ssub.s32 %s18, 2
    %s25 = sadd.s32 %s18, 1
    %s26 = ssub.s32 %s18, %s25
    %p27 = scmp.eq.s32.totalorder %s26, 0
    %s29 = sadd.s32 %s28, 1
    %s30 = scalar_select %p27, %s28, %s29
    %p33 = pneg %p27
    %p34 = scmp.eq.s32.totalorder %s18, 1
    %p35 = por %p33, %p34
    %p36 = scmp.ne.s32.totalorder %s28, %s31
    %p37 = scmp.eq.s32.totalorder %s18, 0
    %p38 = por %p36, %p37
    %p39 = scmp.ne.s32.totalorder %s28, %s31
    %p40 = scmp.eq.s32.totalorder %s23, 1
    %p41 = por %p39, %p40
    %p42 = scmp.ne.s32.totalorder %s31, %s32
    %p43 = scmp.eq.s32.totalorder %s23, 0
    %p44 = por %p42, %p43
    %p45 = scmp.ne.s32.totalorder %s31, %s32
    %p46 = scmp.eq.s32.totalorder %s24, 1
    %p47 = por %p45, %p46
    %p49 = scmp.ne.s32.totalorder %s32, %s48
    %p50 = scmp.eq.s32.totalorder %s24, 0
    %p51 = por %p49, %p50
    %s52 = ssub.s32 %s18, %s25
    %p53 = scmp.eq.s32.totalorder %s52, 0
    %s55 = sadd.s32 %s54, 1
    %s56 = scalar_select %p53, %s54, %s55
    %p59 = pneg %p53
    %p60 = scmp.eq.s32.totalorder %s18, 1
    %p61 = por %p59, %p60
    %p62 = scmp.ne.s32.totalorder %s54, %s57
    %p63 = scmp.eq.s32.totalorder %s18, 0
    %p64 = por %p62, %p63
    %p65 = scmp.ne.s32.totalorder %s54, %s57
    %p66 = scmp.eq.s32.totalorder %s23, 1
    %p67 = por %p65, %p66
    %p68 = scmp.ne.s32.totalorder %s57, %s58
    %p69 = scmp.eq.s32.totalorder %s23, 0
    %p70 = por %p68, %p69
    %p71 = scmp.ne.s32.totalorder %s57, %s58
    %p72 = scmp.eq.s32.totalorder %s24, 1
    %p73 = por %p71, %p72
    %p75 = scmp.ne.s32.totalorder %s58, %s74
    %p76 = scmp.eq.s32.totalorder %s24, 0
    %p77 = por %p75, %p76
    %s79 = sadd.s32 %s78, 1
    %p82 = scmp.eq.s32.totalorder %s18, 1
    %p83 = scmp.ne.s32.totalorder %s78, %s80
    %p84 = scmp.eq.s32.totalorder %s18, 0
    %p85 = por %p83, %p84
    %p86 = scmp.ne.s32.totalorder %s78, %s80
    %p87 = scmp.eq.s32.totalorder %s23, 1
    %p88 = por %p86, %p87
    %p89 = scmp.ne.s32.totalorder %s80, %s81
    %p90 = scmp.eq.s32.totalorder %s23, 0
    %p91 = por %p89, %p90
    %p92 = scmp.ne.s32.totalorder %s80, %s81
    %p93 = scmp.eq.s32.totalorder %s24, 1
    %p94 = por %p92, %p93
    %p96 = scmp.ne.s32.totalorder %s81, %s95
    %p97 = scmp.eq.s32.totalorder %s24, 0
    %p98 = por %p96, %p97
    %s100 = sadd.s32 %s99, 1
    %p103 = scmp.eq.s32.totalorder %s18, 1
    %p104 = scmp.ne.s32.totalorder %s99, %s101
    %p105 = scmp.eq.s32.totalorder %s18, 0
    %p106 = por %p104, %p105
    %p107 = scmp.ne.s32.totalorder %s99, %s101
    %p108 = scmp.eq.s32.totalorder %s23, 1
    %p109 = por %p107, %p108
    %p110 = scmp.ne.s32.totalorder %s101, %s102
    %p111 = scmp.eq.s32.totalorder %s23, 0
    %p112 = por %p110, %p111
    %p113 = scmp.ne.s32.totalorder %s101, %s102
    %p114 = scmp.eq.s32.totalorder %s24, 1
    %p115 = por %p113, %p114
    %p117 = scmp.ne.s32.totalorder %s102, %s116
    %p118 = scmp.eq.s32.totalorder %s24, 0
    %p119 = por %p117, %p118
    %s121 = sadd.s32 %s120, 1
    %p124 = scmp.eq.s32.totalorder %s18, 1
    %p125 = scmp.ne.s32.totalorder %s120, %s122
    %p126 = scmp.eq.s32.totalorder %s18, 0
    %p127 = por %p125, %p126
    %p128 = scmp.ne.s32.totalorder %s120, %s122
    %p129 = scmp.eq.s32.totalorder %s23, 1
    %p130 = por %p128, %p129
    %p131 = scmp.ne.s32.totalorder %s122, %s123
    %p132 = scmp.eq.s32.totalorder %s23, 0
    %p133 = por %p131, %p132
    %p134 = scmp.ne.s32.totalorder %s122, %s123
    %p135 = scmp.eq.s32.totalorder %s24, 1
    %p136 = por %p134, %p135
    %p138 = scmp.ne.s32.totalorder %s123, %s137
    %p139 = scmp.eq.s32.totalorder %s24, 0
    %p140 = por %p138, %p139
    %s142 = sadd.s32 %s141, 1
    %p145 = scmp.eq.s32.totalorder %s18, 1
    %p146 = scmp.ne.s32.totalorder %s141, %s143
    %p147 = scmp.eq.s32.totalorder %s18, 0
    %p148 = por %p146, %p147
    %p149 = scmp.ne.s32.totalorder %s141, %s143
    %p150 = scmp.eq.s32.totalorder %s23, 1
    %p151 = por %p149, %p150
    %p152 = scmp.ne.s32.totalorder %s143, %s144
    %p153 = scmp.eq.s32.totalorder %s23, 0
    %p154 = por %p152, %p153
    %p155 = scmp.ne.s32.totalorder %s143, %s144
    %p156 = scmp.eq.s32.totalorder %s24, 1
    %p157 = por %p155, %p156
    %p159 = scmp.ne.s32.totalorder %s144, %s158
    %p160 = scmp.eq.s32.totalorder %s24, 0
    %p161 = por %p159, %p160
    %s163 = sadd.s32 %s162, 1
    %p166 = scmp.eq.s32.totalorder %s18, 1
    %p167 = scmp.ne.s32.totalorder %s162, %s164
    %p168 = scmp.eq.s32.totalorder %s18, 0
    %p169 = por %p167, %p168
    %p170 = scmp.ne.s32.totalorder %s162, %s164
    %p171 = scmp.eq.s32.totalorder %s23, 1
    %p172 = por %p170, %p171
    %p173 = scmp.ne.s32.totalorder %s164, %s165
    %p174 = scmp.eq.s32.totalorder %s23, 0
    %p175 = por %p173, %p174
    %p176 = scmp.ne.s32.totalorder %s164, %s165
    %p177 = scmp.eq.s32.totalorder %s24, 1
    %p178 = por %p176, %p177
    %p180 = scmp.ne.s32.totalorder %s165, %s179
    %p181 = scmp.eq.s32.totalorder %s24, 0
    %p182 = por %p180, %p181
    %s184 = sadd.s32 %s183, 1
    %p187 = scmp.eq.s32.totalorder %s18, 1
    %p188 = scmp.ne.s32.totalorder %s183, %s185
    %p189 = scmp.eq.s32.totalorder %s18, 0
    %p190 = por %p188, %p189
    %p191 = scmp.ne.s32.totalorder %s183, %s185
    %p192 = scmp.eq.s32.totalorder %s23, 1
    %p193 = por %p191, %p192
    %p194 = scmp.ne.s32.totalorder %s185, %s186
    %p195 = scmp.eq.s32.totalorder %s23, 0
    %p196 = por %p194, %p195
    %p197 = scmp.ne.s32.totalorder %s185, %s186
    %p198 = scmp.eq.s32.totalorder %s24, 1
    %p199 = por %p197, %p198
    %p201 = scmp.ne.s32.totalorder %s186, %s200
    %p202 = scmp.eq.s32.totalorder %s24, 0
    %p203 = por %p201, %p202
    %s205 = sadd.s32 %s204, 1
    %p208 = scmp.eq.s32.totalorder %s18, 1
    %p209 = scmp.ne.s32.totalorder %s204, %s206
    %p210 = scmp.eq.s32.totalorder %s18, 0
    %p211 = por %p209, %p210
    %p212 = scmp.ne.s32.totalorder %s204, %s206
    %p213 = scmp.eq.s32.totalorder %s23, 1
    %p214 = por %p212, %p213
    %p215 = scmp.ne.s32.totalorder %s206, %s207
    %p216 = scmp.eq.s32.totalorder %s23, 0
    %p217 = por %p215, %p216
    %p218 = scmp.ne.s32.totalorder %s206, %s207
    %p219 = scmp.eq.s32.totalorder %s24, 1
    %p220 = por %p218, %p219
    %p222 = scmp.ne.s32.totalorder %s207, %s221
    %p223 = scmp.eq.s32.totalorder %s24, 0
    %p224 = por %p222, %p223
    %s226 = sadd.s32 %s225, 1
    %p229 = scmp.eq.s32.totalorder %s18, 1
    %p230 = scmp.ne.s32.totalorder %s225, %s227
    %p231 = scmp.eq.s32.totalorder %s18, 0
    %p232 = por %p230, %p231
    %p233 = scmp.ne.s32.totalorder %s225, %s227
    %p234 = scmp.eq.s32.totalorder %s23, 1
    %p235 = por %p233, %p234
    %p236 = scmp.ne.s32.totalorder %s227, %s228
    %p237 = scmp.eq.s32.totalorder %s23, 0
    %p238 = por %p236, %p237
    %p239 = scmp.ne.s32.totalorder %s227, %s228
    %p240 = scmp.eq.s32.totalorder %s24, 1
    %p241 = por %p239, %p240
    %p243 = scmp.ne.s32.totalorder %s228, %s242
    %p244 = scmp.eq.s32.totalorder %s24, 0
    %p245 = por %p243, %p244
    %s246 = ssub.s32 %s18, %s25
    %p247 = scmp.eq.s32.totalorder %s246, 0
    %s249 = sadd.s32 %s248, 1
    %s250 = scalar_select %p247, %s248, %s249
    %p253 = pneg %p247
    %p254 = scmp.eq.s32.totalorder %s18, 1
    %p255 = por %p253, %p254
    %p256 = scmp.ne.s32.totalorder %s248, %s251
    %p257 = scmp.eq.s32.totalorder %s18, 0
    %p258 = por %p256, %p257
    %p259 = scmp.ne.s32.totalorder %s248, %s251
    %p260 = scmp.eq.s32.totalorder %s23, 1
    %p261 = por %p259, %p260
    %p262 = scmp.ne.s32.totalorder %s251, %s252
    %p263 = scmp.eq.s32.totalorder %s23, 0
    %p264 = por %p262, %p263
    %p265 = scmp.ne.s32.totalorder %s251, %s252
    %p266 = scmp.eq.s32.totalorder %s24, 1
    %p267 = por %p265, %p266
    %p269 = scmp.ne.s32.totalorder %s252, %s268
    %p270 = scmp.eq.s32.totalorder %s24, 0
    %p271 = por %p269, %p270
    %p272 = scmp.le.s32.totalorder 1, %s18
    %p273 = scmp.lt.s32.totalorder %s18, 3
    %p274 = pnand %p272, %p273
    %p275 = pneg %p274
    // Predicated region
    $region9: #{tpu_custom_call.1} parent=5 // pred_check
      _
    $region10: #{tpu_custom_call.1} parent=5 // pred_check_branch
      %277 = sbr.rel (%p274) target = $region12
    $region11: #{tpu_custom_call.1} parent=5 // pred_region
      %s278 = ssub.s32 %s18, 1
      // Predicated region
      $region13: #{tpu_custom_call.1} parent=11 // pred_check
        %p279 = pneg %p91
      $region14: #{tpu_custom_call.1} parent=11 // pred_check_branch
        %281 = sbr.rel (%p279) target = $region16
      $region15: #{tpu_custom_call.1} parent=11 // pred_region
        _
      $region16: #{tpu_custom_call.1} parent=11 // pred_fallthru
        _
      // Predicated region
      $region17: #{tpu_custom_call.1} parent=11 // pred_check
        %p282 = pneg %p112
      $region18: #{tpu_custom_call.1} parent=11 // pred_check_branch
        %284 = sbr.rel (%p282) target = $region20
      $region19: #{tpu_custom_call.1} parent=11 // pred_region
        _
      $region20: #{tpu_custom_call.1} parent=11 // pred_fallthru
        _
      // Predicated region
      $region21: #{tpu_custom_call.1} parent=11 // pred_check
        %p285 = pneg %p133
      $region22: #{tpu_custom_call.1} parent=11 // pred_check_branch
        %287 = sbr.rel (%p285) target = $region24
      $region23: #{tpu_custom_call.1} parent=11 // pred_region
        _
      $region24: #{tpu_custom_call.1} parent=11 // pred_fallthru
        _
      // Predicated region
      $region25: #{tpu_custom_call.1} parent=11 // pred_check
        %p288 = pneg %p154
      $region26: #{tpu_custom_call.1} parent=11 // pred_check_branch
        %290 = sbr.rel (%p288) target = $region28
      $region27: #{tpu_custom_call.1} parent=11 // pred_region
        _
      $region28: #{tpu_custom_call.1} parent=11 // pred_fallthru
        _
      // Predicated region
      $region29: #{tpu_custom_call.1} parent=11 // pred_check
        %p291 = pneg %p175
      $region30: #{tpu_custom_call.1} parent=11 // pred_check_branch
        %293 = sbr.rel (%p291) target = $region32
      $region31: #{tpu_custom_call.1} parent=11 // pred_region
        _
      $region32: #{tpu_custom_call.1} parent=11 // pred_fallthru
        _
      // Predicated region
      $region33: #{tpu_custom_call.1} parent=11 // pred_check
        %p294 = pneg %p196
      $region34: #{tpu_custom_call.1} parent=11 // pred_check_branch
        %296 = sbr.rel (%p294) target = $region36
      $region35: #{tpu_custom_call.1} parent=11 // pred_region
        _
      $region36: #{tpu_custom_call.1} parent=11 // pred_fallthru
        _
      // Predicated region
      $region37: #{tpu_custom_call.1} parent=11 // pred_check
        %p297 = pneg %p217
      $region38: #{tpu_custom_call.1} parent=11 // pred_check_branch
        %299 = sbr.rel (%p297) target = $region40
      $region39: #{tpu_custom_call.1} parent=11 // pred_region
        _
      $region40: #{tpu_custom_call.1} parent=11 // pred_fallthru
        _
      // Predicated region
      $region41: #{tpu_custom_call.1} parent=11 // pred_check
        %p300 = pneg %p238
      $region42: #{tpu_custom_call.1} parent=11 // pred_check_branch
        %302 = sbr.rel (%p300) target = $region44
      $region43: #{tpu_custom_call.1} parent=11 // pred_region
        _
      $region44: #{tpu_custom_call.1} parent=11 // pred_fallthru
        _
    $region12: #{tpu_custom_call.1} parent=5 // pred_fallthru
      _
    %p303 = scmp.lt.s32.totalorder %s18, 2
    // Predicated region
    $region45: #{tpu_custom_call.1} parent=5 // pred_check
      %p304 = pneg %p303
    $region46: #{tpu_custom_call.1} parent=5 // pred_check_branch
      %306 = sbr.rel (%p304) target = $region48
    $region47: #{tpu_custom_call.1} parent=5 // pred_region
      // Predicated region
      $region49: #{tpu_custom_call.1} parent=47 // pred_check
        %p307 = pneg %p38
      $region50: #{tpu_custom_call.1} parent=47 // pred_check_branch
        %309 = sbr.rel (%p307) target = $region52
      $region51: #{tpu_custom_call.1} parent=47 // pred_region
        %s310 = smul.u32 16, %s18
        %p311 = scmp.lt.s32.totalorder %s310, 31
        %s312 = scalar_select %p311, %s310, 31
        %s313 = smul.addr %s312, 4
        %s314 = scalar_lea.vmem %s0, %s313
        %s315 = smul.u32 16, %s18
      $region52: #{tpu_custom_call.1} parent=47 // pred_fallthru
        _
      // Predicated region
      $region53: #{tpu_custom_call.1} parent=47 // pred_check
        %p316 = pneg %p64
      $region54: #{tpu_custom_call.1} parent=47 // pred_check_branch
        %318 = sbr.rel (%p316) target = $region56
      $region55: #{tpu_custom_call.1} parent=47 // pred_region
        %s319 = smul.u32 16, %s18
        %p320 = scmp.lt.s32.totalorder %s319, 31
        %s321 = scalar_select %p320, %s319, 31
        %s322 = smul.addr %s321, 4
        %s323 = scalar_lea.vmem %s1, %s322
        %s324 = smul.u32 16, %s18
      $region56: #{tpu_custom_call.1} parent=47 // pred_fallthru
        _
    $region48: #{tpu_custom_call.1} parent=5 // pred_fallthru
      _
    %p325 = scmp.le.s32.totalorder 1, %s18
    %p326 = scmp.lt.s32.totalorder %s18, 3
    %p327 = pnand %p325, %p326
    %p328 = pneg %p327
    // Predicated region
    $region57: #{tpu_custom_call.1} parent=5 // pred_check
      _
    $region58: #{tpu_custom_call.1} parent=5 // pred_check_branch
      %330 = sbr.rel (%p327) target = $region60
    $region59: #{tpu_custom_call.1} parent=5 // pred_region
      %s331 = ssub.s32 %s18, 1
      %s332 = smul.u32 16, %s23
      %p333 = scmp.lt.s32.totalorder %s332, 31
      %s334 = scalar_select %p333, %s332, 31
      %s335 = smul.addr %s334, 4
      %s336 = scalar_lea.vmem %s0, %s335
      %p337 = pneg %p44
      %p338 = pneg %p41
      %s339 = smul.u32 16, %s23
      %p340 = scmp.lt.s32.totalorder %s339, 31
      %s341 = scalar_select %p340, %s339, 31
      %s342 = smul.addr %s341, 4
      %s343 = scalar_lea.vmem %s1, %s342
      %p344 = pneg %p70
      %p345 = pneg %p67
      %p346 = pneg %p91
      %p347 = pneg %p88
      %p348 = pneg %p112
      %p349 = pneg %p109
      %p350 = pneg %p133
      %p351 = pneg %p130
      %p352 = pneg %p154
      %p353 = pneg %p151
      %p354 = pneg %p175
      %p355 = pneg %p172
      %p356 = pneg %p196
      %p357 = pneg %p193
      %p358 = pneg %p217
      %p359 = pneg %p214
      %p360 = pneg %p238
      %p361 = pneg %p235
      %p362 = pneg %p264
      %p363 = pneg %p261
      %s364 = smul.u32 16, %s23
      %p365 = scmp.lt.s32.totalorder %s364, 31
      %s366 = scalar_select %p365, %s364, 31
      %s367 = smul.addr %s366, 8
      %s368 = scalar_lea.vmem %s10, %s367
      %s369 = smul.u32 16, %s23
      %p370 = scmp.lt.s32.totalorder %s369, 31
      %s371 = scalar_select %p370, %s369, 31
      %s372 = smul.addr %s371, 4
      %s373 = scalar_lea.vmem %s0, %s372
      %s374 = smul.u32 16, %s23
      %s375 = smul.u32 16, %s23
      %p376 = scmp.lt.s32.totalorder %s375, 31
      %s377 = scalar_select %p376, %s375, 31
      %s378 = smul.addr %s377, 4
      %s379 = scalar_lea.vmem %s1, %s378
      %s380 = smul.u32 16, %s23
      %s381 = smul.u32 16, %s23
      %p382 = scmp.lt.s32.totalorder %s381, 31
      %s383 = scalar_select %p382, %s381, 31
      %s384 = smul.addr %s383, 8
      %s385 = scalar_lea.vmem %s10, %s384
      %s386 = smul.u32 16, %s23
      %v388 = vld [vmem:[%s373] sm:$0xf]
      %v389 = vld [vmem:[%s373 + $0x4] sm:$0xf]
      %v390 = vld [vmem:[%s373 + $0x8] sm:$0xf]
      %v391 = vld [vmem:[%s373 + $0xc] sm:$0xf]
      %v392 = vld [vmem:[%s373 + $0x10] sm:$0xf]
      %v393 = vld [vmem:[%s373 + $0x14] sm:$0xf]
      %v394 = vld [vmem:[%s373 + $0x18] sm:$0xf]
      %v395 = vld [vmem:[%s373 + $0x1c] sm:$0xf]
      %v396 = vld [vmem:[%s373 + $0x20] sm:$0xf]
      %v397 = vld [vmem:[%s373 + $0x24] sm:$0xf]
      %v398 = vld [vmem:[%s373 + $0x28] sm:$0xf]
      %v399 = vld [vmem:[%s373 + $0x2c] sm:$0xf]
      %v400 = vld [vmem:[%s373 + $0x30] sm:$0xf]
      %v401 = vld [vmem:[%s373 + $0x34] sm:$0xf]
      %v402 = vld [vmem:[%s373 + $0x38] sm:$0xf]
      %v403 = vld [vmem:[%s373 + $0x3c] sm:$0xf]
      %v404 = vld [vmem:[%s379] sm:$0xf]
      %v405 = vld [vmem:[%s379 + $0x4] sm:$0xf]
      %v406 = vld [vmem:[%s379 + $0x8] sm:$0xf]
      %v407 = vld [vmem:[%s379 + $0xc] sm:$0xf]
      %v408 = vld [vmem:[%s379 + $0x10] sm:$0xf]
      %v409 = vld [vmem:[%s379 + $0x14] sm:$0xf]
      %v410 = vld [vmem:[%s379 + $0x18] sm:$0xf]
      %v411 = vld [vmem:[%s379 + $0x1c] sm:$0xf]
      %v412 = vld [vmem:[%s379 + $0x20] sm:$0xf]
      %v413 = vld [vmem:[%s379 + $0x24] sm:$0xf]
      %v414 = vld [vmem:[%s379 + $0x28] sm:$0xf]
      %v415 = vld [vmem:[%s379 + $0x2c] sm:$0xf]
      %v416 = vld [vmem:[%s379 + $0x30] sm:$0xf]
      %v417 = vld [vmem:[%s379 + $0x34] sm:$0xf]
      %v418 = vld [vmem:[%s379 + $0x38] sm:$0xf]
      %v419 = vld [vmem:[%s379 + $0x3c] sm:$0xf]
      %v420 = vunpack.c.l.bf16 %v388
      %v421 = vunpack.c.l.bf16 %v389
      %v422 = vunpack.c.l.bf16 %v390
      %v423 = vunpack.c.l.bf16 %v391
      %v424 = vunpack.c.l.bf16 %v392
      %v425 = vunpack.c.l.bf16 %v393
      %v426 = vunpack.c.l.bf16 %v394
      %v427 = vunpack.c.l.bf16 %v395
      %v428 = vunpack.c.l.bf16 %v396
      %v429 = vunpack.c.l.bf16 %v397
      %v430 = vunpack.c.l.bf16 %v398
      %v431 = vunpack.c.l.bf16 %v399
      %v432 = vunpack.c.l.bf16 %v400
      %v433 = vunpack.c.l.bf16 %v401
      %v434 = vunpack.c.l.bf16 %v402
      %v435 = vunpack.c.l.bf16 %v403
      %v436 = vunpack.c.l.bf16 %v404
      %v437 = vunpack.c.l.bf16 %v405
      %v438 = vunpack.c.l.bf16 %v406
      %v439 = vunpack.c.l.bf16 %v407
      %v440 = vunpack.c.l.bf16 %v408
      %v441 = vunpack.c.l.bf16 %v409
      %v442 = vunpack.c.l.bf16 %v410
      %v443 = vunpack.c.l.bf16 %v411
      %v444 = vunpack.c.l.bf16 %v412
      %v445 = vunpack.c.l.bf16 %v413
      %v446 = vunpack.c.l.bf16 %v414
      %v447 = vunpack.c.l.bf16 %v415
      %v448 = vunpack.c.l.bf16 %v416
      %v449 = vunpack.c.l.bf16 %v417
      %v450 = vunpack.c.l.bf16 %v418
      %v451 = vunpack.c.l.bf16 %v419
      %v452 = vmul.f32 %v420, %v436
      %v453 = vmul.f32 %v421, %v437
      %v454 = vmul.f32 %v422, %v438
      %v455 = vmul.f32 %v423, %v439
      %v456 = vmul.f32 %v424, %v440
      %v457 = vmul.f32 %v425, %v441
      %v458 = vmul.f32 %v426, %v442
      %v459 = vmul.f32 %v427, %v443
      %v460 = vmul.f32 %v428, %v444
      %v461 = vmul.f32 %v429, %v445
      %v462 = vmul.f32 %v430, %v446
      %v463 = vmul.f32 %v431, %v447
      %v464 = vmul.f32 %v432, %v448
      %v465 = vmul.f32 %v433, %v449
      %v466 = vmul.f32 %v434, %v450
      %v467 = vmul.f32 %v435, %v451
      %v468 = vld [vmem:[%s2] sm:$0xf]
      %v469 = vld [vmem:[%s3] sm:$0xf]
      %v486 = vunpack.c.l.b16 %v404
      %v487 = vunpack.c.l.b16 %v405
      %v488 = vunpack.c.l.b16 %v406
      %v489 = vunpack.c.l.b16 %v407
      %v490 = vunpack.c.l.b16 %v408
      %v491 = vunpack.c.l.b16 %v409
      %v492 = vunpack.c.l.b16 %v410
      %v493 = vunpack.c.l.b16 %v411
      %v494 = vunpack.c.l.b16 %v412
      %v495 = vunpack.c.l.b16 %v413
      %v496 = vunpack.c.l.b16 %v414
      %v497 = vunpack.c.l.b16 %v415
      %v498 = vunpack.c.l.b16 %v416
      %v499 = vunpack.c.l.b16 %v417
      %v500 = vunpack.c.l.b16 %v418
      %v501 = vunpack.c.l.b16 %v419
      %v502 = vpack.c.b16 %v487, %v486
      %v503 = vpack.c.b16 %v489, %v488
      %v504 = vpack.c.b16 %v491, %v490
      %v505 = vpack.c.b16 %v493, %v492
      %v506 = vpack.c.b16 %v495, %v494
      %v507 = vpack.c.b16 %v497, %v496
      %v508 = vpack.c.b16 %v499, %v498
      %v509 = vpack.c.b16 %v501, %v500
      %510 = vrot.lane.b32.xlu0 %v502, 120
      %v511 = vpop.permute.xlu0 %510
      %512 = vrot.lane.b32.xlu0 %v503, 120
      %v513 = vpop.permute.xlu0 %512
      %514 = vrot.lane.b32.xlu0 %v504, 120
      %v515 = vpop.permute.xlu0 %514
      %516 = vrot.lane.b32.xlu0 %v505, 120
      %v517 = vpop.permute.xlu0 %516
      %518 = vrot.lane.b32.xlu0 %v506, 120
      %v519 = vpop.permute.xlu0 %518
      %520 = vrot.lane.b32.xlu0 %v507, 120
      %v521 = vpop.permute.xlu0 %520
      %522 = vrot.lane.b32.xlu0 %v508, 120
      %v523 = vpop.permute.xlu0 %522
      %524 = vrot.lane.b32.xlu0 %v509, 120
      %v525 = vpop.permute.xlu0 %524
      %vm526 = vcmask 64512
      %v528 = vsel %vm526, %v511, 0
      %v531 = vsel %vm526, %v513, 0
      %v534 = vsel %vm526, %v515, 0
      %v537 = vsel %vm526, %v517, 0
      %v540 = vsel %vm526, %v519, 0
      %v543 = vsel %vm526, %v521, 0
      %v546 = vsel %vm526, %v523, 0
      %v549 = vsel %vm526, %v525, 0
      %vm551 = vcmask 1043456
      %v553 = vsel %vm551, %v469, 0
      %555 = vmatprep.subr.bf16.mxu0 0
      %556 = vmatpush1.bf16.msra.mxu0 0
      %557 = vmatprep.subr.bf16.mxu0 0
      %558 = vmatpush1.bf16.msra.mxu0 0
      %559 = vmatprep.subr.bf16.mxu0 0
      %560 = vmatpush1.bf16.msra.mxu0 0
      %561 = vmatprep.subr.bf16.mxu0 0
      %562 = vmatpush1.bf16.msra.mxu0 0
      %563 = vmatprep.subr.bf16.mxu0 0
      %564 = vmatpush1.bf16.msra.mxu0 0
      %565 = vmatprep.subr.bf16.mxu0 0
      %566 = vmatpush1.bf16.msra.mxu0 0
      %567 = vmatprep.subr.bf16.mxu0 0
      %568 = vmatpush1.bf16.msra.mxu0 0
      %569 = vmatprep.subr.bf16.mxu0 0
      %570 = vmatpush1.bf16.msra.mxu0 %v553
      %571 = vmatprep.subr.bf16.mxu0 0
      %572 = vmatpush2.bf16.msra.mxu0 0
      %573 = vmatprep.subr.bf16.mxu0 0
      %574 = vmatpush2.bf16.msra.mxu0 0
      %575 = vmatprep.subr.bf16.mxu0 0
      %576 = vmatpush2.bf16.msra.mxu0 0
      %577 = vmatprep.subr.bf16.mxu0 0
      %578 = vmatpush2.bf16.msra.mxu0 0
      %579 = vmatprep.subr.bf16.mxu0 0
      %580 = vmatpush2.bf16.msra.mxu0 0
      %581 = vmatprep.subr.bf16.mxu0 0
      %582 = vmatpush2.bf16.msra.mxu0 0
      %583 = vmatprep.subr.bf16.mxu0 0
      %584 = vmatpush2.bf16.msra.mxu0 0
      %585 = vmatprep.subr.bf16.mxu0 0
      %586 = vmatpush2.bf16.msra.mxu0 0
      %587 = vmatprep.mubr.bf16.mxu0 0
      %588 = vmatmul.mubr.bf16.gmra.mxu0 %v528
      %v589 = vpop.f32.mrf.mxu0
      %v590 = vadd.f32 0.0, %v589
      %v591 = vpop.f32.mrf.mxu0
      %v592 = vpop.f32.mrf.mxu0
      %v593 = vadd.f32 0.0, %v592
      %v594 = vpop.f32.mrf.mxu0
      %595 = vmatprep.mubr.bf16.mxu0 0
      %596 = vmatmul.mubr.bf16.gmra.mxu0 %v531
      %v597 = vpop.f32.mrf.mxu0
      %v598 = vadd.f32 0.0, %v597
      %v599 = vpop.f32.mrf.mxu0
      %v600 = vpop.f32.mrf.mxu0
      %v601 = vadd.f32 0.0, %v600
      %v602 = vpop.f32.mrf.mxu0
      %603 = vmatprep.mubr.bf16.mxu0 0
      %604 = vmatmul.mubr.bf16.gmra.mxu0 %v534
      %v605 = vpop.f32.mrf.mxu0
      %v606 = vadd.f32 0.0, %v605
      %v607 = vpop.f32.mrf.mxu0
      %v608 = vpop.f32.mrf.mxu0
      %v609 = vadd.f32 0.0, %v608
      %v610 = vpop.f32.mrf.mxu0
      %611 = vmatprep.mubr.bf16.mxu0 0
      %612 = vmatmul.mubr.bf16.gmra.mxu0 %v537
      %v613 = vpop.f32.mrf.mxu0
      %v614 = vadd.f32 0.0, %v613
      %v615 = vpop.f32.mrf.mxu0
      %v616 = vpop.f32.mrf.mxu0
      %v617 = vadd.f32 0.0, %v616
      %v618 = vpop.f32.mrf.mxu0
      %619 = vmatprep.mubr.bf16.mxu0 0
      %620 = vmatmul.mubr.bf16.gmra.mxu0 %v540
      %v621 = vpop.f32.mrf.mxu0
      %v622 = vadd.f32 0.0, %v621
      %v623 = vpop.f32.mrf.mxu0
      %v624 = vpop.f32.mrf.mxu0
      %v625 = vadd.f32 0.0, %v624
      %v626 = vpop.f32.mrf.mxu0
      %627 = vmatprep.mubr.bf16.mxu0 0
      %628 = vmatmul.mubr.bf16.gmra.mxu0 %v543
      %v629 = vpop.f32.mrf.mxu0
      %v630 = vadd.f32 0.0, %v629
      %v631 = vpop.f32.mrf.mxu0
      %v632 = vpop.f32.mrf.mxu0
      %v633 = vadd.f32 0.0, %v632
      %v634 = vpop.f32.mrf.mxu0
      %635 = vmatprep.mubr.bf16.mxu0 0
      %636 = vmatmul.mubr.bf16.gmra.mxu0 %v546
      %v637 = vpop.f32.mrf.mxu0
      %v638 = vadd.f32 0.0, %v637
      %v639 = vpop.f32.mrf.mxu0
      %v640 = vpop.f32.mrf.mxu0
      %v641 = vadd.f32 0.0, %v640
      %v642 = vpop.f32.mrf.mxu0
      %643 = vmatprep.mubr.bf16.mxu0 0
      %644 = vmatmul.mubr.bf16.gmra.mxu0 %v549
      %v645 = vpop.f32.mrf.mxu0
      %v646 = vadd.f32 0.0, %v645
      %v647 = vpop.f32.mrf.mxu0
      %v648 = vpop.f32.mrf.mxu0
      %v649 = vadd.f32 0.0, %v648
      %v650 = vpop.f32.mrf.mxu0
      %651 = vdwg.mxu0
      %v668 = vunpack.c.l.b16 %v388
      %v669 = vunpack.c.l.b16 %v389
      %v670 = vunpack.c.l.b16 %v390
      %v671 = vunpack.c.l.b16 %v391
      %v672 = vunpack.c.l.b16 %v392
      %v673 = vunpack.c.l.b16 %v393
      %v674 = vunpack.c.l.b16 %v394
      %v675 = vunpack.c.l.b16 %v395
      %v676 = vunpack.c.l.b16 %v396
      %v677 = vunpack.c.l.b16 %v397
      %v678 = vunpack.c.l.b16 %v398
      %v679 = vunpack.c.l.b16 %v399
      %v680 = vunpack.c.l.b16 %v400
      %v681 = vunpack.c.l.b16 %v401
      %v682 = vunpack.c.l.b16 %v402
      %v683 = vunpack.c.l.b16 %v403
      %v684 = vpack.c.b16 %v669, %v668
      %v685 = vpack.c.b16 %v671, %v670
      %v686 = vpack.c.b16 %v673, %v672
      %v687 = vpack.c.b16 %v675, %v674
      %v688 = vpack.c.b16 %v677, %v676
      %v689 = vpack.c.b16 %v679, %v678
      %v690 = vpack.c.b16 %v681, %v680
      %v691 = vpack.c.b16 %v683, %v682
      %692 = vrot.lane.b32.xlu0 %v684, 120
      %v693 = vpop.permute.xlu0 %692
      %694 = vrot.lane.b32.xlu0 %v685, 120
      %v695 = vpop.permute.xlu0 %694
      %696 = vrot.lane.b32.xlu0 %v686, 120
      %v697 = vpop.permute.xlu0 %696
      %698 = vrot.lane.b32.xlu0 %v687, 120
      %v699 = vpop.permute.xlu0 %698
      %700 = vrot.lane.b32.xlu0 %v688, 120
      %v701 = vpop.permute.xlu0 %700
      %702 = vrot.lane.b32.xlu0 %v689, 120
      %v703 = vpop.permute.xlu0 %702
      %704 = vrot.lane.b32.xlu0 %v690, 120
      %v705 = vpop.permute.xlu0 %704
      %706 = vrot.lane.b32.xlu0 %v691, 120
      %v707 = vpop.permute.xlu0 %706
      %v709 = vsel %vm526, %v693, 0
      %v712 = vsel %vm526, %v695, 0
      %v715 = vsel %vm526, %v697, 0
      %v718 = vsel %vm526, %v699, 0
      %v721 = vsel %vm526, %v701, 0
      %v724 = vsel %vm526, %v703, 0
      %v727 = vsel %vm526, %v705, 0
      %v730 = vsel %vm526, %v707, 0
      %v733 = vsel %vm551, %v468, 0
      %735 = vmatprep.subr.bf16.mxu0 0
      %736 = vmatpush1.bf16.msra.mxu0 0
      %737 = vmatprep.subr.bf16.mxu0 0
      %738 = vmatpush1.bf16.msra.mxu0 0
      %739 = vmatprep.subr.bf16.mxu0 0
      %740 = vmatpush1.bf16.msra.mxu0 0
      %741 = vmatprep.subr.bf16.mxu0 0
      %742 = vmatpush1.bf16.msra.mxu0 0
      %743 = vmatprep.subr.bf16.mxu0 0
      %744 = vmatpush1.bf16.msra.mxu0 0
      %745 = vmatprep.subr.bf16.mxu0 0
      %746 = vmatpush1.bf16.msra.mxu0 0
      %747 = vmatprep.subr.bf16.mxu0 0
      %748 = vmatpush1.bf16.msra.mxu0 0
      %749 = vmatprep.subr.bf16.mxu0 0
      %750 = vmatpush1.bf16.msra.mxu0 %v733
      %751 = vmatprep.subr.bf16.mxu0 0
      %752 = vmatpush2.bf16.msra.mxu0 0
      %753 = vmatprep.subr.bf16.mxu0 0
      %754 = vmatpush2.bf16.msra.mxu0 0
      %755 = vmatprep.subr.bf16.mxu0 0
      %756 = vmatpush2.bf16.msra.mxu0 0
      %757 = vmatprep.subr.bf16.mxu0 0
      %758 = vmatpush2.bf16.msra.mxu0 0
      %759 = vmatprep.subr.bf16.mxu0 0
      %760 = vmatpush2.bf16.msra.mxu0 0
      %761 = vmatprep.subr.bf16.mxu0 0
      %762 = vmatpush2.bf16.msra.mxu0 0
      %763 = vmatprep.subr.bf16.mxu0 0
      %764 = vmatpush2.bf16.msra.mxu0 0
      %765 = vmatprep.subr.bf16.mxu0 0
      %766 = vmatpush2.bf16.msra.mxu0 0
      %767 = vmatprep.mubr.bf16.mxu0 0
      %768 = vmatmul.mubr.bf16.gmra.mxu0 %v709
      %v769 = vpop.f32.mrf.mxu0
      %v770 = vadd.f32 %v590, %v769
      %v771 = vpop.f32.mrf.mxu0
      %v772 = vpop.f32.mrf.mxu0
      %v773 = vadd.f32 %v593, %v772
      %v774 = vpop.f32.mrf.mxu0
      %775 = vmatprep.mubr.bf16.mxu0 0
      %776 = vmatmul.mubr.bf16.gmra.mxu0 %v712
      %v777 = vpop.f32.mrf.mxu0
      %v778 = vadd.f32 %v598, %v777
      %v779 = vpop.f32.mrf.mxu0
      %v780 = vpop.f32.mrf.mxu0
      %v781 = vadd.f32 %v601, %v780
      %v782 = vpop.f32.mrf.mxu0
      %783 = vmatprep.mubr.bf16.mxu0 0
      %784 = vmatmul.mubr.bf16.gmra.mxu0 %v715
      %v785 = vpop.f32.mrf.mxu0
      %v786 = vadd.f32 %v606, %v785
      %v787 = vpop.f32.mrf.mxu0
      %v788 = vpop.f32.mrf.mxu0
      %v789 = vadd.f32 %v609, %v788
      %v790 = vpop.f32.mrf.mxu0
      %791 = vmatprep.mubr.bf16.mxu0 0
      %792 = vmatmul.mubr.bf16.gmra.mxu0 %v718
      %v793 = vpop.f32.mrf.mxu0
      %v794 = vadd.f32 %v614, %v793
      %v795 = vpop.f32.mrf.mxu0
      %v796 = vpop.f32.mrf.mxu0
      %v797 = vadd.f32 %v617, %v796
      %v798 = vpop.f32.mrf.mxu0
      %799 = vmatprep.mubr.bf16.mxu0 0
      %800 = vmatmul.mubr.bf16.gmra.mxu0 %v721
      %v801 = vpop.f32.mrf.mxu0
      %v802 = vadd.f32 %v622, %v801
      %v803 = vpop.f32.mrf.mxu0
      %v804 = vpop.f32.mrf.mxu0
      %v805 = vadd.f32 %v625, %v804
      %v806 = vpop.f32.mrf.mxu0
      %807 = vmatprep.mubr.bf16.mxu0 0
      %808 = vmatmul.mubr.bf16.gmra.mxu0 %v724
      %v809 = vpop.f32.mrf.mxu0
      %v810 = vadd.f32 %v630, %v809
      %v811 = vpop.f32.mrf.mxu0
      %v812 = vpop.f32.mrf.mxu0
      %v813 = vadd.f32 %v633, %v812
      %v814 = vpop.f32.mrf.mxu0
      %815 = vmatprep.mubr.bf16.mxu0 0
      %816 = vmatmul.mubr.bf16.gmra.mxu0 %v727
      %v817 = vpop.f32.mrf.mxu0
      %v818 = vadd.f32 %v638, %v817
      %v819 = vpop.f32.mrf.mxu0
      %v820 = vpop.f32.mrf.mxu0
      %v821 = vadd.f32 %v641, %v820
      %v822 = vpop.f32.mrf.mxu0
      %823 = vmatprep.mubr.bf16.mxu0 0
      %824 = vmatmul.mubr.bf16.gmra.mxu0 %v730
      %v825 = vpop.f32.mrf.mxu0
      %v826 = vadd.f32 %v646, %v825
      %v827 = vpop.f32.mrf.mxu0
      %v828 = vpop.f32.mrf.mxu0
      %v829 = vadd.f32 %v649, %v828
      %v830 = vpop.f32.mrf.mxu0
      %831 = vdwg.mxu0
      %v832 = vld [vmem:[%s4] sm:$0x1]
      %v834 = vlaneseq
      %v835 = vshrl.u32 %v834, 7
      %v836 = vsub.s32 0, %v835
      %v837 = vrot.slane %v832, %v836
      %v839 = vadd.f32 %v770, %v837
      %v840 = vadd.f32 %v773, %v837
      %v841 = vadd.f32 %v778, %v837
      %v842 = vadd.f32 %v781, %v837
      %v843 = vadd.f32 %v786, %v837
      %v844 = vadd.f32 %v789, %v837
      %v845 = vadd.f32 %v794, %v837
      %v846 = vadd.f32 %v797, %v837
      %v847 = vadd.f32 %v802, %v837
      %v848 = vadd.f32 %v805, %v837
      %v849 = vadd.f32 %v810, %v837
      %v850 = vadd.f32 %v813, %v837
      %v851 = vadd.f32 %v818, %v837
      %v852 = vadd.f32 %v821, %v837
      %v853 = vadd.f32 %v826, %v837
      %v854 = vadd.f32 %v829, %v837
      %v855 = vld [vmem:[%s5] sm:$0xf]
      %v856 = vld [vmem:[%s5 + $0x4] sm:$0xf]
      %v857 = vld [vmem:[%s5 + $0x8] sm:$0xf]
      %v858 = vld [vmem:[%s5 + $0xc] sm:$0xf]
      %v859 = vunpack.c.l.bf16 %v855
      %v860 = vunpack.c.l.bf16 %v856
      %v861 = vunpack.c.l.bf16 %v857
      %v862 = vunpack.c.l.bf16 %v858
      %v863 = vld [vmem:[%s6] sm:$0x1]
      %v865 = vlaneseq
      %v866 = vshrl.u32 %v865, 7
      %v867 = vsub.s32 0, %v866
      %v868 = vrot.slane %v863, %v867
      %vm870 = vcmask 261120
      %v872 = vsel %vm870, %v839, 0
      %v875 = vsel %vm870, %v840, 0
      %v878 = vsel %vm870, %v841, 0
      %v881 = vsel %vm870, %v842, 0
      %v884 = vsel %vm870, %v843, 0
      %v887 = vsel %vm870, %v844, 0
      %v890 = vsel %vm870, %v845, 0
      %v893 = vsel %vm870, %v846, 0
      %v896 = vsel %vm870, %v847, 0
      %v899 = vsel %vm870, %v848, 0
      %v902 = vsel %vm870, %v849, 0
      %v905 = vsel %vm870, %v850, 0
      %v908 = vsel %vm870, %v851, 0
      %v911 = vsel %vm870, %v852, 0
      %v914 = vsel %vm870, %v853, 0
      %v917 = vsel %vm870, %v854, 0
      %919 = vmatprep.subr.mxu0 0.0
      %920 = vmatpush1.msra.mxu0 0.0
      %921 = vmatprep.subr.mxu0 0.0
      %922 = vmatpush1.msra.mxu0 0.0
      %923 = vmatprep.subr.mxu0 0.0
      %924 = vmatpush1.msra.mxu0 0.0
      %925 = vmatprep.subr.mxu0 0.0
      %926 = vmatpush1.msra.mxu0 0.0
      %927 = vmatprep.subr.mxu0 0.0
      %928 = vmatpush1.msra.mxu0 0.0
      %929 = vmatprep.subr.mxu0 0.0
      %930 = vmatpush1.msra.mxu0 0.0
      %931 = vmatprep.subr.mxu0 0.0
      %932 = vmatpush1.msra.mxu0 0.0
      %933 = vmatprep.subr.mxu0 0.0
      %934 = vmatpush1.msra.mxu0 0.0
      %935 = vmatprep.subr.mxu0 0.0
      %936 = vmatpush1.msra.mxu0 0.0
      %937 = vmatprep.subr.mxu0 0.0
      %938 = vmatpush1.msra.mxu0 0.0
      %939 = vmatprep.subr.mxu0 0.0
      %940 = vmatpush1.msra.mxu0 0.0
      %941 = vmatprep.subr.mxu0 0.0
      %942 = vmatpush1.msra.mxu0 0.0
      %943 = vmatprep.subr.mxu0 0.0
      %944 = vmatpush1.msra.mxu0 %v862
      %945 = vmatprep.subr.mxu0 0.0
      %946 = vmatpush1.msra.mxu0 %v861
      %947 = vmatprep.subr.mxu0 0.0
      %948 = vmatpush1.msra.mxu0 %v860
      %949 = vmatprep.subr.mxu0 0.0
      %950 = vmatpush1.msra.mxu0 %v859
      %951 = vmatprep.subr.mxu0 0.0
      %952 = vmatpush2.msra.mxu0 0.0
      %953 = vmatprep.subr.mxu0 0.0
      %954 = vmatpush2.msra.mxu0 0.0
      %955 = vmatprep.subr.mxu0 0.0
      %956 = vmatpush2.msra.mxu0 0.0
      %957 = vmatprep.subr.mxu0 0.0
      %958 = vmatpush2.msra.mxu0 0.0
      %959 = vmatprep.subr.mxu0 0.0
      %960 = vmatpush2.msra.mxu0 0.0
      %961 = vmatprep.subr.mxu0 0.0
      %962 = vmatpush2.msra.mxu0 0.0
      %963 = vmatprep.subr.mxu0 0.0
      %964 = vmatpush2.msra.mxu0 0.0
      %965 = vmatprep.subr.mxu0 0.0
      %966 = vmatpush2.msra.mxu0 0.0
      %967 = vmatprep.subr.mxu0 0.0
      %968 = vmatpush2.msra.mxu0 0.0
      %969 = vmatprep.subr.mxu0 0.0
      %970 = vmatpush2.msra.mxu0 0.0
      %971 = vmatprep.subr.mxu0 0.0
      %972 = vmatpush2.msra.mxu0 0.0
      %973 = vmatprep.subr.mxu0 0.0
      %974 = vmatpush2.msra.mxu0 0.0
      %975 = vmatprep.subr.mxu0 0.0
      %976 = vmatpush2.msra.mxu0 0.0
      %977 = vmatprep.subr.mxu0 0.0
      %978 = vmatpush2.msra.mxu0 0.0
      %979 = vmatprep.subr.mxu0 0.0
      %980 = vmatpush2.msra.mxu0 0.0
      %981 = vmatprep.subr.mxu0 0.0
      %982 = vmatpush2.msra.mxu0 0.0
      %983 = vmatprep.mubr.f32.mxu0 0.0
      %984 = vmatmul.mubr.f32.gmra.mxu0 %v872
      %v985 = vpop.f32.mrf.mxu0
      %v986 = vadd.f32 %v868, %v985
      %v987 = vpop.f32.mrf.mxu0
      %988 = vmatprep.mubr.f32.mxu0 0.0
      %989 = vmatmul.mubr.f32.gmra.mxu0 %v875
      %v990 = vpop.f32.mrf.mxu0
      %v991 = vadd.f32 %v868, %v990
      %v992 = vpop.f32.mrf.mxu0
      %993 = vmatprep.mubr.f32.mxu0 0.0
      %994 = vmatmul.mubr.f32.gmra.mxu0 %v878
      %v995 = vpop.f32.mrf.mxu0
      %v996 = vadd.f32 %v868, %v995
      %v997 = vpop.f32.mrf.mxu0
      %998 = vmatprep.mubr.f32.mxu0 0.0
      %999 = vmatmul.mubr.f32.gmra.mxu0 %v881
      %v1000 = vpop.f32.mrf.mxu0
      %v1001 = vadd.f32 %v868, %v1000
      %v1002 = vpop.f32.mrf.mxu0
      %1003 = vmatprep.mubr.f32.mxu0 0.0
      %1004 = vmatmul.mubr.f32.gmra.mxu0 %v884
      %v1005 = vpop.f32.mrf.mxu0
      %v1006 = vadd.f32 %v868, %v1005
      %v1007 = vpop.f32.mrf.mxu0
      %1008 = vmatprep.mubr.f32.mxu0 0.0
      %1009 = vmatmul.mubr.f32.gmra.mxu0 %v887
      %v1010 = vpop.f32.mrf.mxu0
      %v1011 = vadd.f32 %v868, %v1010
      %v1012 = vpop.f32.mrf.mxu0
      %1013 = vmatprep.mubr.f32.mxu0 0.0
      %1014 = vmatmul.mubr.f32.gmra.mxu0 %v890
      %v1015 = vpop.f32.mrf.mxu0
      %v1016 = vadd.f32 %v868, %v1015
      %v1017 = vpop.f32.mrf.mxu0
      %1018 = vmatprep.mubr.f32.mxu0 0.0
      %1019 = vmatmul.mubr.f32.gmra.mxu0 %v893
      %v1020 = vpop.f32.mrf.mxu0
      %v1021 = vadd.f32 %v868, %v1020
      %v1022 = vpop.f32.mrf.mxu0
      %1023 = vmatprep.mubr.f32.mxu0 0.0
      %1024 = vmatmul.mubr.f32.gmra.mxu0 %v896
      %v1025 = vpop.f32.mrf.mxu0
      %v1026 = vadd.f32 %v868, %v1025
      %v1027 = vpop.f32.mrf.mxu0
      %1028 = vmatprep.mubr.f32.mxu0 0.0
      %1029 = vmatmul.mubr.f32.gmra.mxu0 %v899
      %v1030 = vpop.f32.mrf.mxu0
      %v1031 = vadd.f32 %v868, %v1030
      %v1032 = vpop.f32.mrf.mxu0
      %1033 = vmatprep.mubr.f32.mxu0 0.0
      %1034 = vmatmul.mubr.f32.gmra.mxu0 %v902
      %v1035 = vpop.f32.mrf.mxu0
      %v1036 = vadd.f32 %v868, %v1035
      %v1037 = vpop.f32.mrf.mxu0
      %1038 = vmatprep.mubr.f32.mxu0 0.0
      %1039 = vmatmul.mubr.f32.gmra.mxu0 %v905
      %v1040 = vpop.f32.mrf.mxu0
      %v1041 = vadd.f32 %v868, %v1040
      %v1042 = vpop.f32.mrf.mxu0
      %1043 = vmatprep.mubr.f32.mxu0 0.0
      %1044 = vmatmul.mubr.f32.gmra.mxu0 %v908
      %v1045 = vpop.f32.mrf.mxu0
      %v1046 = vadd.f32 %v868, %v1045
      %v1047 = vpop.f32.mrf.mxu0
      %1048 = vmatprep.mubr.f32.mxu0 0.0
      %1049 = vmatmul.mubr.f32.gmra.mxu0 %v911
      %v1050 = vpop.f32.mrf.mxu0
      %v1051 = vadd.f32 %v868, %v1050
      %v1052 = vpop.f32.mrf.mxu0
      %1053 = vmatprep.mubr.f32.mxu0 0.0
      %1054 = vmatmul.mubr.f32.gmra.mxu0 %v914
      %v1055 = vpop.f32.mrf.mxu0
      %v1056 = vadd.f32 %v868, %v1055
      %v1057 = vpop.f32.mrf.mxu0
      %1058 = vmatprep.mubr.f32.mxu0 0.0
      %1059 = vmatmul.mubr.f32.gmra.mxu0 %v917
      %v1060 = vpop.f32.mrf.mxu0
      %v1061 = vadd.f32 %v868, %v1060
      %v1062 = vpop.f32.mrf.mxu0
      %1063 = vdwg.mxu0
      %v1064 = vmax.f32 %v986, 0.0
      %v1065 = vmax.f32 %v991, 0.0
      %v1066 = vmax.f32 %v996, 0.0
      %v1067 = vmax.f32 %v1001, 0.0
      %v1068 = vmax.f32 %v1006, 0.0
      %v1069 = vmax.f32 %v1011, 0.0
      %v1070 = vmax.f32 %v1016, 0.0
      %v1071 = vmax.f32 %v1021, 0.0
      %v1072 = vmax.f32 %v1026, 0.0
      %v1073 = vmax.f32 %v1031, 0.0
      %v1074 = vmax.f32 %v1036, 0.0
      %v1075 = vmax.f32 %v1041, 0.0
      %v1076 = vmax.f32 %v1046, 0.0
      %v1077 = vmax.f32 %v1051, 0.0
      %v1078 = vmax.f32 %v1056, 0.0
      %v1079 = vmax.f32 %v1061, 0.0
      %v1080 = vld [vmem:[%s7] sm:$0x1]
      %v1081 = vunpack.c.l.bf16 %v1080
      %v1082 = vld [vmem:[%s8] sm:$0x1]
      %v1083 = vunpack.c.l.bf16 %v1082
      %v1084 = vlaneseq
      %v1085 = vshrl.u32 %v1084, 7
      %v1086 = vsub.s32 0, %v1085
      %v1087 = vrot.slane %v1081, %v1086
      %v1088 = vmul.f32 %v452, %v1087
      %v1089 = vmul.f32 %v453, %v1087
      %v1090 = vmul.f32 %v454, %v1087
      %v1091 = vmul.f32 %v455, %v1087
      %v1092 = vmul.f32 %v456, %v1087
      %v1093 = vmul.f32 %v457, %v1087
      %v1094 = vmul.f32 %v458, %v1087
      %v1095 = vmul.f32 %v459, %v1087
      %v1096 = vmul.f32 %v460, %v1087
      %v1097 = vmul.f32 %v461, %v1087
      %v1098 = vmul.f32 %v462, %v1087
      %v1099 = vmul.f32 %v463, %v1087
      %v1100 = vmul.f32 %v464, %v1087
      %v1101 = vmul.f32 %v465, %v1087
      %v1102 = vmul.f32 %v466, %v1087
      %v1103 = vmul.f32 %v467, %v1087
      %v1104 = vsel %vm526, %v1088, 0.0
      %1105 = vadd.xlane.f32.xlu0 %v1104
      %v1106 = vpop.xlane.xlu0 %1105
      %v1107 = vsel %vm526, %v1089, 0.0
      %1108 = vadd.xlane.f32.xlu0 %v1107
      %v1109 = vpop.xlane.xlu0 %1108
      %v1110 = vsel %vm526, %v1090, 0.0
      %1111 = vadd.xlane.f32.xlu0 %v1110
      %v1112 = vpop.xlane.xlu0 %1111
      %v1113 = vsel %vm526, %v1091, 0.0
      %1114 = vadd.xlane.f32.xlu0 %v1113
      %v1115 = vpop.xlane.xlu0 %1114
      %v1116 = vsel %vm526, %v1092, 0.0
      %1117 = vadd.xlane.f32.xlu0 %v1116
      %v1118 = vpop.xlane.xlu0 %1117
      %v1119 = vsel %vm526, %v1093, 0.0
      %1120 = vadd.xlane.f32.xlu0 %v1119
      %v1121 = vpop.xlane.xlu0 %1120
      %v1122 = vsel %vm526, %v1094, 0.0
      %1123 = vadd.xlane.f32.xlu0 %v1122
      %v1124 = vpop.xlane.xlu0 %1123
      %v1125 = vsel %vm526, %v1095, 0.0
      %1126 = vadd.xlane.f32.xlu0 %v1125
      %v1127 = vpop.xlane.xlu0 %1126
      %v1128 = vsel %vm526, %v1096, 0.0
      %1129 = vadd.xlane.f32.xlu0 %v1128
      %v1130 = vpop.xlane.xlu0 %1129
      %v1131 = vsel %vm526, %v1097, 0.0
      %1132 = vadd.xlane.f32.xlu0 %v1131
      %v1133 = vpop.xlane.xlu0 %1132
      %v1134 = vsel %vm526, %v1098, 0.0
      %1135 = vadd.xlane.f32.xlu0 %v1134
      %v1136 = vpop.xlane.xlu0 %1135
      %v1137 = vsel %vm526, %v1099, 0.0
      %1138 = vadd.xlane.f32.xlu0 %v1137
      %v1139 = vpop.xlane.xlu0 %1138
      %v1140 = vsel %vm526, %v1100, 0.0
      %1141 = vadd.xlane.f32.xlu0 %v1140
      %v1142 = vpop.xlane.xlu0 %1141
      %v1143 = vsel %vm526, %v1101, 0.0
      %1144 = vadd.xlane.f32.xlu0 %v1143
      %v1145 = vpop.xlane.xlu0 %1144
      %v1146 = vsel %vm526, %v1102, 0.0
      %1147 = vadd.xlane.f32.xlu0 %v1146
      %v1148 = vpop.xlane.xlu0 %1147
      %v1149 = vsel %vm526, %v1103, 0.0
      %1150 = vadd.xlane.f32.xlu0 %v1149
      %v1151 = vpop.xlane.xlu0 %1150
      %v1152 = vlaneseq
      %v1153 = vshrl.u32 %v1152, 7
      %v1154 = vsub.s32 0, %v1153
      %v1155 = vrot.slane %v1083, %v1154
      %v1156 = vmul.f32 %v1064, %v1155
      %v1157 = vmul.f32 %v1065, %v1155
      %v1158 = vmul.f32 %v1066, %v1155
      %v1159 = vmul.f32 %v1067, %v1155
      %v1160 = vmul.f32 %v1068, %v1155
      %v1161 = vmul.f32 %v1069, %v1155
      %v1162 = vmul.f32 %v1070, %v1155
      %v1163 = vmul.f32 %v1071, %v1155
      %v1164 = vmul.f32 %v1072, %v1155
      %v1165 = vmul.f32 %v1073, %v1155
      %v1166 = vmul.f32 %v1074, %v1155
      %v1167 = vmul.f32 %v1075, %v1155
      %v1168 = vmul.f32 %v1076, %v1155
      %v1169 = vmul.f32 %v1077, %v1155
      %v1170 = vmul.f32 %v1078, %v1155
      %v1171 = vmul.f32 %v1079, %v1155
      %vm1172 = vcmask 130048
      %v1173 = vsel %vm1172, %v1156, 0.0
      %1174 = vadd.xlane.f32.xlu0 %v1173
      %v1175 = vpop.xlane.xlu0 %1174
      %v1176 = vsel %vm1172, %v1157, 0.0
      %1177 = vadd.xlane.f32.xlu0 %v1176
      %v1178 = vpop.xlane.xlu0 %1177
      %v1179 = vsel %vm1172, %v1158, 0.0
      %1180 = vadd.xlane.f32.xlu0 %v1179
      %v1181 = vpop.xlane.xlu0 %1180
      %v1182 = vsel %vm1172, %v1159, 0.0
      %1183 = vadd.xlane.f32.xlu0 %v1182
      %v1184 = vpop.xlane.xlu0 %1183
      %v1185 = vsel %vm1172, %v1160, 0.0
      %1186 = vadd.xlane.f32.xlu0 %v1185
      %v1187 = vpop.xlane.xlu0 %1186
      %v1188 = vsel %vm1172, %v1161, 0.0
      %1189 = vadd.xlane.f32.xlu0 %v1188
      %v1190 = vpop.xlane.xlu0 %1189
      %v1191 = vsel %vm1172, %v1162, 0.0
      %1192 = vadd.xlane.f32.xlu0 %v1191
      %v1193 = vpop.xlane.xlu0 %1192
      %v1194 = vsel %vm1172, %v1163, 0.0
      %1195 = vadd.xlane.f32.xlu0 %v1194
      %v1196 = vpop.xlane.xlu0 %1195
      %v1197 = vsel %vm1172, %v1164, 0.0
      %1198 = vadd.xlane.f32.xlu0 %v1197
      %v1199 = vpop.xlane.xlu0 %1198
      %v1200 = vsel %vm1172, %v1165, 0.0
      %1201 = vadd.xlane.f32.xlu0 %v1200
      %v1202 = vpop.xlane.xlu0 %1201
      %v1203 = vsel %vm1172, %v1166, 0.0
      %1204 = vadd.xlane.f32.xlu0 %v1203
      %v1205 = vpop.xlane.xlu0 %1204
      %v1206 = vsel %vm1172, %v1167, 0.0
      %1207 = vadd.xlane.f32.xlu0 %v1206
      %v1208 = vpop.xlane.xlu0 %1207
      %v1209 = vsel %vm1172, %v1168, 0.0
      %1210 = vadd.xlane.f32.xlu0 %v1209
      %v1211 = vpop.xlane.xlu0 %1210
      %v1212 = vsel %vm1172, %v1169, 0.0
      %1213 = vadd.xlane.f32.xlu0 %v1212
      %v1214 = vpop.xlane.xlu0 %1213
      %v1215 = vsel %vm1172, %v1170, 0.0
      %1216 = vadd.xlane.f32.xlu0 %v1215
      %v1217 = vpop.xlane.xlu0 %1216
      %v1218 = vsel %vm1172, %v1171, 0.0
      %1219 = vadd.xlane.f32.xlu0 %v1218
      %v1220 = vpop.xlane.xlu0 %1219
      %v1221 = vadd.f32 %v1106, %v1175
      %v1222 = vadd.f32 %v1109, %v1178
      %v1223 = vadd.f32 %v1112, %v1181
      %v1224 = vadd.f32 %v1115, %v1184
      %v1225 = vadd.f32 %v1118, %v1187
      %v1226 = vadd.f32 %v1121, %v1190
      %v1227 = vadd.f32 %v1124, %v1193
      %v1228 = vadd.f32 %v1127, %v1196
      %v1229 = vadd.f32 %v1130, %v1199
      %v1230 = vadd.f32 %v1133, %v1202
      %v1231 = vadd.f32 %v1136, %v1205
      %v1232 = vadd.f32 %v1139, %v1208
      %v1233 = vadd.f32 %v1142, %v1211
      %v1234 = vadd.f32 %v1145, %v1214
      %v1235 = vadd.f32 %v1148, %v1217
      %v1236 = vadd.f32 %v1151, %v1220
      %v1237 = vld [vmem:[#allocation2] sm:$0x1]
      %v1239 = vlaneseq
      %v1240 = vshrl.u32 %v1239, 7
      %v1241 = vsub.s32 0, %v1240
      %v1242 = vrot.slane %v1237, %v1241
      %v1244 = vadd.f32 %v1221, %v1242
      %v1245 = vadd.f32 %v1222, %v1242
      %v1246 = vadd.f32 %v1223, %v1242
      %v1247 = vadd.f32 %v1224, %v1242
      %v1248 = vadd.f32 %v1225, %v1242
      %v1249 = vadd.f32 %v1226, %v1242
      %v1250 = vadd.f32 %v1227, %v1242
      %v1251 = vadd.f32 %v1228, %v1242
      %v1252 = vadd.f32 %v1229, %v1242
      %v1253 = vadd.f32 %v1230, %v1242
      %v1254 = vadd.f32 %v1231, %v1242
      %v1255 = vadd.f32 %v1232, %v1242
      %v1256 = vadd.f32 %v1233, %v1242
      %v1257 = vadd.f32 %v1234, %v1242
      %v1258 = vadd.f32 %v1235, %v1242
      %v1259 = vadd.f32 %v1236, %v1242
      %v1260 = vsub.f32 0.0, %v1244
      %v1261 = vsub.f32 0.0, %v1245
      %v1262 = vsub.f32 0.0, %v1246
      %v1263 = vsub.f32 0.0, %v1247
      %v1264 = vsub.f32 0.0, %v1248
      %v1265 = vsub.f32 0.0, %v1249
      %v1266 = vsub.f32 0.0, %v1250
      %v1267 = vsub.f32 0.0, %v1251
      %v1268 = vsub.f32 0.0, %v1252
      %v1269 = vsub.f32 0.0, %v1253
      %v1270 = vsub.f32 0.0, %v1254
      %v1271 = vsub.f32 0.0, %v1255
      %v1272 = vsub.f32 0.0, %v1256
      %v1273 = vsub.f32 0.0, %v1257
      %v1274 = vsub.f32 0.0, %v1258
      %v1275 = vsub.f32 0.0, %v1259
      %v1276 = vmul.f32 %v1260, 1.442695
      %v1277 = vpow.pop %v1276
      %v1278 = vmul.f32 %v1261, 1.442695
      %v1279 = vpow.pop %v1278
      %v1280 = vmul.f32 %v1262, 1.442695
      %v1281 = vpow.pop %v1280
      %v1282 = vmul.f32 %v1263, 1.442695
      %v1283 = vpow.pop %v1282
      %v1284 = vmul.f32 %v1264, 1.442695
      %v1285 = vpow.pop %v1284
      %v1286 = vmul.f32 %v1265, 1.442695
      %v1287 = vpow.pop %v1286
      %v1288 = vmul.f32 %v1266, 1.442695
      %v1289 = vpow.pop %v1288
      %v1290 = vmul.f32 %v1267, 1.442695
      %v1291 = vpow.pop %v1290
      %v1292 = vmul.f32 %v1268, 1.442695
      %v1293 = vpow.pop %v1292
      %v1294 = vmul.f32 %v1269, 1.442695
      %v1295 = vpow.pop %v1294
      %v1296 = vmul.f32 %v1270, 1.442695
      %v1297 = vpow.pop %v1296
      %v1298 = vmul.f32 %v1271, 1.442695
      %v1299 = vpow.pop %v1298
      %v1300 = vmul.f32 %v1272, 1.442695
      %v1301 = vpow.pop %v1300
      %v1302 = vmul.f32 %v1273, 1.442695
      %v1303 = vpow.pop %v1302
      %v1304 = vmul.f32 %v1274, 1.442695
      %v1305 = vpow.pop %v1304
      %v1306 = vmul.f32 %v1275, 1.442695
      %v1307 = vpow.pop %v1306
      %v1308 = vadd.f32 %v1277, 1.0
      %v1309 = vadd.f32 %v1279, 1.0
      %v1310 = vadd.f32 %v1281, 1.0
      %v1311 = vadd.f32 %v1283, 1.0
      %v1312 = vadd.f32 %v1285, 1.0
      %v1313 = vadd.f32 %v1287, 1.0
      %v1314 = vadd.f32 %v1289, 1.0
      %v1315 = vadd.f32 %v1291, 1.0
      %v1316 = vadd.f32 %v1293, 1.0
      %v1317 = vadd.f32 %v1295, 1.0
      %v1318 = vadd.f32 %v1297, 1.0
      %v1319 = vadd.f32 %v1299, 1.0
      %v1320 = vadd.f32 %v1301, 1.0
      %v1321 = vadd.f32 %v1303, 1.0
      %v1322 = vadd.f32 %v1305, 1.0
      %v1323 = vadd.f32 %v1307, 1.0
      %v1324 = vrcp.pop %v1308
      %v1325 = vmul.f32 1.0, %v1324
      %v1326 = vrcp.pop %v1309
      %v1327 = vmul.f32 1.0, %v1326
      %v1328 = vrcp.pop %v1310
      %v1329 = vmul.f32 1.0, %v1328
      %v1330 = vrcp.pop %v1311
      %v1331 = vmul.f32 1.0, %v1330
      %v1332 = vrcp.pop %v1312
      %v1333 = vmul.f32 1.0, %v1332
      %v1334 = vrcp.pop %v1313
      %v1335 = vmul.f32 1.0, %v1334
      %v1336 = vrcp.pop %v1314
      %v1337 = vmul.f32 1.0, %v1336
      %v1338 = vrcp.pop %v1315
      %v1339 = vmul.f32 1.0, %v1338
      %v1340 = vrcp.pop %v1316
      %v1341 = vmul.f32 1.0, %v1340
      %v1342 = vrcp.pop %v1317
      %v1343 = vmul.f32 1.0, %v1342
      %v1344 = vrcp.pop %v1318
      %v1345 = vmul.f32 1.0, %v1344
      %v1346 = vrcp.pop %v1319
      %v1347 = vmul.f32 1.0, %v1346
      %v1348 = vrcp.pop %v1320
      %v1349 = vmul.f32 1.0, %v1348
      %v1350 = vrcp.pop %v1321
      %v1351 = vmul.f32 1.0, %v1350
      %v1352 = vrcp.pop %v1322
      %v1353 = vmul.f32 1.0, %v1352
      %v1354 = vrcp.pop %v1323
      %v1355 = vmul.f32 1.0, %v1354
      %vm1356 = vcmask 7168
      %1357 = vst.msk [vmem:[%s385] sm:$0xff] %vm1356, %v1325
      %1358 = vst.msk [vmem:[%s385 + $0x8] sm:$0xff] %vm1356, %v1327
      %1359 = vst.msk [vmem:[%s385 + $0x10] sm:$0xff] %vm1356, %v1329
      %1360 = vst.msk [vmem:[%s385 + $0x18] sm:$0xff] %vm1356, %v1331
      %1361 = vst.msk [vmem:[%s385 + $0x20] sm:$0xff] %vm1356, %v1333
      %1362 = vst.msk [vmem:[%s385 + $0x28] sm:$0xff] %vm1356, %v1335
      %1363 = vst.msk [vmem:[%s385 + $0x30] sm:$0xff] %vm1356, %v1337
      %1364 = vst.msk [vmem:[%s385 + $0x38] sm:$0xff] %vm1356, %v1339
      %1365 = vst.msk [vmem:[%s385 + $0x40] sm:$0xff] %vm1356, %v1341
      %1366 = vst.msk [vmem:[%s385 + $0x48] sm:$0xff] %vm1356, %v1343
      %1367 = vst.msk [vmem:[%s385 + $0x50] sm:$0xff] %vm1356, %v1345
      %1368 = vst.msk [vmem:[%s385 + $0x58] sm:$0xff] %vm1356, %v1347
      %1369 = vst.msk [vmem:[%s385 + $0x60] sm:$0xff] %vm1356, %v1349
      %1370 = vst.msk [vmem:[%s385 + $0x68] sm:$0xff] %vm1356, %v1351
      %1371 = vst.msk [vmem:[%s385 + $0x70] sm:$0xff] %vm1356, %v1353
      %1372 = vst.msk [vmem:[%s385 + $0x78] sm:$0xff] %vm1356, %v1355
      %s1373 = smul.u32 16, %s23
      %p1374 = scmp.lt.s32.totalorder %s1373, 31
      %s1375 = scalar_select %p1374, %s1373, 31
      %s1376 = smul.addr %s1375, 8
      %s1377 = scalar_lea.vmem %s10, %s1376
      // Predicated region
      $region61: #{tpu_custom_call.1} parent=59 // pred_check
        %p1378 = pneg %p261
      $region62: #{tpu_custom_call.1} parent=59 // pred_check_branch
        %1380 = sbr.rel (%p1378) target = $region64
      $region63: #{tpu_custom_call.1} parent=59 // pred_region
        %s1381 = smul.u32 16, %s23
      $region64: #{tpu_custom_call.1} parent=59 // pred_fallthru
        _
    $region60: #{tpu_custom_call.1} parent=5 // pred_fallthru
      _
    %p1382 = scmp.le.s32.totalorder 2, %s18
    // Predicated region
    $region65: #{tpu_custom_call.1} parent=5 // pred_check
      %p1383 = pneg %p1382
    $region66: #{tpu_custom_call.1} parent=5 // pred_check_branch
      %1385 = sbr.rel (%p1383) target = $region68
    $region67: #{tpu_custom_call.1} parent=5 // pred_region
      %s1386 = ssub.s32 %s18, 2
      // Predicated region
      $region69: #{tpu_custom_call.1} parent=67 // pred_check
        %p1387 = pneg %p267
      $region70: #{tpu_custom_call.1} parent=67 // pred_check_branch
        %1389 = sbr.rel (%p1387) target = $region72
      $region71: #{tpu_custom_call.1} parent=67 // pred_region
        %s1390 = smul.u32 16, %s24
        %p1391 = scmp.lt.s32.totalorder %s1390, 31
        %s1392 = scalar_select %p1391, %s1390, 31
        %s1393 = smul.addr %s1392, 8
        %s1394 = scalar_lea.vmem %s10, %s1393
      $region72: #{tpu_custom_call.1} parent=67 // pred_fallthru
        _
    $region68: #{tpu_custom_call.1} parent=5 // pred_fallthru
      _
  $region6: #{tpu_custom_call.1} parent=0 // loop_footer
    %s22 = sadd.s32 1, %s18
  $region7: #{tpu_custom_call.1} parent=0 // loop_footer_branch
    %17 = sbr.rel target = $region3
  $region8: #{tpu_custom_call.1} parent=0 // loop_exit
    _

</llo_original>
